<compile_context>
chip_gen: v7x
topology: tpu7x:2x2x1
jax: 0.10.0
libtpu: 0.0.40
codegen_flags: <defaults>
</compile_context>

<pallas_src>
import functools
import inspect

import jax
import jax.numpy as jnp
from jax.experimental import pallas as pl
from jax.experimental.pallas import tpu as pltpu


def _round_up(v, m):
    return (v + m - 1) // m * m


# ----------------------------------------------------------------------------
# Capability / chip detection (done once, lazily)
# ----------------------------------------------------------------------------
def _supports_pipeline_mode():
    if not hasattr(pl, "Buffered"):
        return False
    try:
        return "pipeline_mode" in inspect.signature(pl.BlockSpec).parameters
    except (TypeError, ValueError):
        return False


_HAS_PIPELINE_MODE = _supports_pipeline_mode()
_PIPELINE_MODE_ERRS = (
    TypeError, ValueError, NotImplementedError,
    getattr(pltpu, "LoweringException", NotImplementedError),
)


@functools.lru_cache(maxsize=1)
def _chip_config():
    """Returns (vmem_plan_bytes, vmem_limit_bytes, num_tensorcores)."""
    cap = None
    try:
        cap = int(pltpu.get_tpu_info().vmem_capacity_bytes)
    except Exception:
        cap = None
    kind = ""
    try:
        kind = jax.devices()[0].device_kind.lower()
    except Exception:
        pass
    if cap is None or cap <= 0:
        if "v5" in kind or "v6" in kind:
            cap = 128 << 20
        else:
            cap = 64 << 20          # conservative (v7x per-TC VMEM)
    plan = max(32 << 20, cap - (28 << 20))    # 128 MiB -> ~100 MiB, 64 MiB -> 36 MiB
    limit = max(40 << 20, cap - (18 << 20))   # 128 MiB -> ~110 MiB, 64 MiB -> 46 MiB
    num_tc = 2 if "v7" in kind else 1
    return plan, limit, num_tc


# ----------------------------------------------------------------------------
# Kernels
# ----------------------------------------------------------------------------
def _linear_bias_relu_kernel(x_ref, wt_ref, b_ref, o_ref, *, compute_dtype):
    # x_ref: (tm, K)  wt_ref: (K, N)  b_ref: (1, N)  o_ref: (tm, N)
    x = x_ref[...]
    if compute_dtype is not None and x.dtype != compute_dtype:
        x = x.astype(compute_dtype)          # in-kernel cast (VPU), no extra HBM pass
    acc = jnp.dot(x, wt_ref[...], preferred_element_type=jnp.float32)
    o_ref[...] = jnp.maximum(acc + b_ref[...], 0.0).astype(o_ref.dtype)


def _linear_bias_relu_acc_inplace_kernel(x_ref, wt_ref, b_ref, o_ref, *,
                                         compute_dtype):
    # Tiled-K variant, f32 output: accumulate directly into the resident output
    # block (its block index does not change along the k axis).
    k = pl.program_id(2)

    @pl.when(k == 0)
    def _():
        o_ref[...] = jnp.zeros_like(o_ref)

    x = x_ref[...]
    if compute_dtype is not None and x.dtype != compute_dtype:
        x = x.astype(compute_dtype)
    o_ref[...] += jnp.dot(x, wt_ref[...], preferred_element_type=jnp.float32)

    @pl.when(k == pl.num_programs(2) - 1)
    def _():
        o_ref[...] = jnp.maximum(o_ref[...] + b_ref[...], 0.0)


def _linear_bias_relu_acc_scratch_kernel(x_ref, wt_ref, b_ref, o_ref, acc_ref, *,
                                         compute_dtype):
    # Tiled-K variant, narrow output dtype: f32 scratch accumulator.
    k = pl.program_id(2)

    @pl.when(k == 0)
    def _():
        acc_ref[...] = jnp.zeros_like(acc_ref)

    x = x_ref[...]
    if compute_dtype is not None and x.dtype != compute_dtype:
        x = x.astype(compute_dtype)
    acc_ref[...] += jnp.dot(x, wt_ref[...], preferred_element_type=jnp.float32)

    @pl.when(k == pl.num_programs(2) - 1)
    def _():
        o_ref[...] = jnp.maximum(acc_ref[...] + b_ref[...],
                                 0.0).astype(o_ref.dtype)


# ----------------------------------------------------------------------------
# Tile selection helpers
# ----------------------------------------------------------------------------
def _pick_tm(batch, bytes_per_row, budget_bytes, *, align=8, num_tc=1):
    """Largest `align`-aligned batch tile (<=1024) whose per-step VMEM cost fits
    `budget_bytes`. On multi-TC chips (v7x), nudge toward an even step count so
    both TensorCores get equal work; single-TC chips take the largest tile."""
    if batch <= align:
        return batch
    tm = min(1024, _round_up(batch, align))
    while tm > align and tm * bytes_per_row > budget_bytes:
        tm -= align
    tm = max(align, tm)
    if num_tc > 1:
        steps = pl.cdiv(batch, tm)
        if steps % 2 == 1:
            tm_even = max(align, _round_up(pl.cdiv(batch, steps + 1), align))
            if pl.cdiv(batch, tm_even) % 2 == 0:
                tm = tm_even
    return tm


def _pick_divisor_tile(dim, candidates):
    for c in candidates:
        if dim % c == 0:
            return c
    return dim


# ----------------------------------------------------------------------------
# pallas_call dispatch
# ----------------------------------------------------------------------------
def _linear_pallas(x, wt, bias2d, out_dtype, *, compute_dtype=None,
                   force_tiled=False, tile_override=None):
    B, K = x.shape
    K2, N = wt.shape
    assert K == K2
    plan_bytes, limit_bytes, num_tc = _chip_config()

    x_bytes = jnp.dtype(x.dtype).itemsize
    w_bytes = jnp.dtype(wt.dtype).itemsize
    o_bytes = jnp.dtype(out_dtype).itemsize
    op_bytes = (jnp.dtype(compute_dtype).itemsize
                if compute_dtype is not None else x_bytes)
    align = 16 if op_bytes == 2 else (32 if op_bytes == 1 else 8)

    cost = pl.CostEstimate(
        flops=2 * B * K * N,
        transcendentals=0,
        bytes_accessed=(B * K * x_bytes + K * N * w_bytes + N * 4
                        + B * N * o_bytes),
    )

    # With single-buffered resident weight/bias (Buffered(1) accepted), plan the
    # weight at 1x its size; otherwise assume default double buffering.
    single_buffer = _HAS_PIPELINE_MODE
    w_copies = 1 if single_buffer else 2
    resident_fixed = w_copies * (K * N * w_bytes + N * 4)
    row_bytes = 2 * (K * x_bytes + N * o_bytes)     # double-buffered x + out tiles
    resident_budget = plan_bytes - resident_fixed
    weight_resident = (not force_tiled) and resident_budget >= align * row_bytes

    if weight_resident:
        # ---- Path A: full weight resident in VMEM, grid over batch only ----
        tm = _pick_tm(B, row_bytes, resident_budget, align=align, num_tc=num_tc)
        grid = (pl.cdiv(B, tm),)
        kernel = functools.partial(_linear_bias_relu_kernel,
                                   compute_dtype=compute_dtype)

        def build(res_kw):
            return pl.pallas_call(
                kernel,
                out_shape=jax.ShapeDtypeStruct((B, N), out_dtype),
                grid_spec=pltpu.PrefetchScalarGridSpec(
                    num_scalar_prefetch=0,
                    grid=grid,
                    in_specs=[
                        pl.BlockSpec((tm, K), lambda i: (i, 0)),        # x tile
                        pl.BlockSpec((K, N), lambda i: (0, 0), **res_kw),  # weight
                        pl.BlockSpec((1, N), lambda i: (0, 0), **res_kw),  # bias
                    ],
                    out_specs=pl.BlockSpec((tm, N), lambda i: (i, 0)),
                ),
                compiler_params=pltpu.CompilerParams(
                    dimension_semantics=("parallel",),
                    vmem_limit_bytes=limit_bytes,
                ),
                cost_estimate=cost,
            )(x, wt, bias2d)

        if single_buffer:
            try:
                return build({"pipeline_mode": pl.Buffered(1)})
            except _PIPELINE_MODE_ERRS:
                pass  # Buffered(1) rejected by this Pallas version -> default buffering
        return build({})

    # ---- Path B: (M, N, K) tiled matmul with resident output/accumulator ----
    direct = jnp.dtype(out_dtype) == jnp.dtype(jnp.float32)
    if tile_override is not None:
        tm, tn, tk = tile_override
        assert K % tk == 0, "tile_override tk must divide K (reduction tail would be dropped)"
        assert N % tn == 0, "tile_override tn must divide (padded) N"
    else:
        tk = _pick_divisor_tile(K, (1024, 512, 256, 128))
        tn = N
        if N % 128 == 0:
            for cand in (4096, 2048, 1024, 512, 256, 128):
                if N % cand == 0 and 2 * tk * cand * w_bytes <= plan_bytes // 2:
                    tn = cand
                    break
        fixed = 2 * tk * tn * w_bytes + 2 * tn * 4
        per_row = 2 * tk * x_bytes + 2 * tn * o_bytes + (0 if direct else tn * 4)
        tm = _pick_tm(B, per_row, plan_bytes - fixed, align=align, num_tc=num_tc)

    grid = (pl.cdiv(B, tm), pl.cdiv(N, tn), K // tk)
    if direct:
        kernel = functools.partial(_linear_bias_relu_acc_inplace_kernel,
                                   compute_dtype=compute_dtype)
        scratch = []
    else:
        kernel = functools.partial(_linear_bias_relu_acc_scratch_kernel,
                                   compute_dtype=compute_dtype)
        scratch = [pltpu.VMEM((tm, tn), jnp.float32)]

    return pl.pallas_call(
        kernel,
        out_shape=jax.ShapeDtypeStruct((B, N), out_dtype),
        grid_spec=pltpu.PrefetchScalarGridSpec(
            num_scalar_prefetch=0,
            grid=grid,
            in_specs=[
                pl.BlockSpec((tm, tk), lambda i, j, k: (i, k)),
                pl.BlockSpec((tk, tn), lambda i, j, k: (k, j)),
                pl.BlockSpec((1, tn), lambda i, j, k: (0, j)),
            ],
            out_specs=pl.BlockSpec((tm, tn), lambda i, j, k: (i, j)),
            scratch_shapes=scratch,
        ),
        compiler_params=pltpu.CompilerParams(
            dimension_semantics=("parallel", "parallel", "arbitrary"),
            vmem_limit_bytes=limit_bytes,
        ),
        cost_estimate=cost,
    )(x, wt, bias2d)


# ----------------------------------------------------------------------------
# Public API: LinearBlock(input_c, output_c, norm='none', act='relu')
# ----------------------------------------------------------------------------
def prepare_linear_block_params(weight, bias, *, compute_dtype=None):
    """ONE-TIME parameter prep (fold into model init, not the per-call path):
    weight [out_c, in_c] (PyTorch nn.Linear layout) -> [in_c, out_c_pad] with the
    output-feature dim padded to a multiple of 128 lanes (lane-dense stores),
    optionally cast to `compute_dtype`; bias -> [1, out_c_pad] float32.
    Returns (wt, bias2d, out_c)."""
    N, K = weight.shape
    n_pad = _round_up(N, 128)
    wt = weight.T
    b2 = bias.astype(jnp.float32).reshape(1, N)
    if n_pad != N:
        wt = jnp.pad(wt, ((0, 0), (0, n_pad - N)))
        b2 = jnp.pad(b2, ((0, 0), (0, n_pad - N)))
    if compute_dtype is not None:
        wt = wt.astype(compute_dtype)
    return wt, b2, N


def linear_block_apply(x, wt, bias2d, out_features=None, *, compute_dtype=None,
                       force_tiled=False, tile_override=None):
    """out = relu(x @ wt + bias) using pre-prepared params from
    `prepare_linear_block_params`. Accumulation is always float32; the output
    keeps x.dtype. Padded lanes (exactly relu(0+0)=0) are sliced off."""
    out = _linear_pallas(x, wt, bias2d, x.dtype, compute_dtype=compute_dtype,
                         force_tiled=force_tiled, tile_override=tile_override)
    if out_features is not None and out_features != out.shape[1]:
        out = out[:, :out_features]
    return out


def linear_block_forward(x, weight, bias, *, compute_dtype=None,
                         force_tiled=False, tile_override=None):
    """Convenience wrapper (prep + apply). In a real model, call
    `prepare_linear_block_params` once at init and reuse its outputs."""
    wt, b2, n = prepare_linear_block_params(weight, bias,
                                            compute_dtype=compute_dtype)
    return linear_block_apply(x, wt, b2, n, compute_dtype=compute_dtype,
                              force_tiled=force_tiled,
                              tile_override=tile_override)


def linear_block_reference(x, weight, bias):
    return jnp.maximum(x @ weight.T + bias, 0.0)


if __name__ == "__main__":
    key = jax.random.PRNGKey(0)

    # Shapes consistent with nn.Linear(input_c=32, output_c=64) at batch=8.
    batch, input_c, output_c = 8, 32, 64
    kx, kw, kb = jax.random.split(key, 3)
    x = jax.random.normal(kx, (batch, input_c), dtype=jnp.float32)
    limit = 1.0 / jnp.sqrt(jnp.float32(input_c))
    weight = jax.random.uniform(kw, (output_c, input_c), jnp.float32, -limit, limit)
    bias = jax.random.uniform(kb, (output_c,), jnp.float32, -limit, limit)

    ref = linear_block_reference(x, weight, bias)

    # f32 MXU operands (exact vs. reference up to fp rounding), params prepped once.
    wt_p, b_p, n_out = prepare_linear_block_params(weight, bias)
    out = jax.block_until_ready(linear_block_apply(x, wt_p, b_p, n_out))
    assert out.shape == (batch, output_c)
    assert jnp.allclose(out, ref, atol=1e-5, rtol=1e-5)

    # bf16 MXU operands (weight stored bf16, x cast in-kernel), f32 accumulation.
    wt_bf, b_bf, _ = prepare_linear_block_params(weight, bias,
                                                 compute_dtype=jnp.bfloat16)
    out_bf16 = jax.block_until_ready(
        linear_block_apply(x, wt_bf, b_bf, n_out, compute_dtype=jnp.bfloat16))
    assert jnp.allclose(out_bf16, ref, atol=1e-1, rtol=1e-1)

    # Multi-row batch + 256-wide lane-aligned output (resident-weight Path A).
    kx2, kw2, kb2 = jax.random.split(jax.random.PRNGKey(1), 3)
    x2 = jax.random.normal(kx2, (256, 128), dtype=jnp.float32)
    w2 = jax.random.normal(kw2, (256, 128), dtype=jnp.float32) * 0.05
    b2_ = jax.random.normal(kb2, (256,), dtype=jnp.float32) * 0.05
    out2 = jax.block_until_ready(linear_block_forward(x2, w2, b2_))
    assert jnp.allclose(out2, linear_block_reference(x2, w2, b2_),
                        atol=1e-4, rtol=1e-4)

    # Exercise the (M, N, K)-tiled fallback path explicitly (validated override).
    kx3, kw3, kb3 = jax.random.split(jax.random.PRNGKey(2), 3)
    x3 = jax.random.normal(kx3, (64, 256), dtype=jnp.float32)
    w3 = jax.random.normal(kw3, (256, 256), dtype=jnp.float32) * 0.05
    b3_ = jax.random.normal(kb3, (256,), dtype=jnp.float32) * 0.05
    out3 = jax.block_until_ready(
        linear_block_forward(x3, w3, b3_, force_tiled=True,
                             tile_override=(32, 128, 128)))
    assert jnp.allclose(out3, linear_block_reference(x3, w3, b3_),
                        atol=1e-4, rtol=1e-4)

    print("KERNEL_OK")
</pallas_src>

<mosaic_0001>
module attributes {stable_mosaic.version = 11 : i64} {
  func.func @_linear_bias_relu_kernel(%arg0: i32, %arg1: memref<8x32xf32, #tpu.memory_space<vmem>>, %arg2: memref<32x128xf32, #tpu.memory_space<vmem>>, %arg3: memref<1x128xf32, #tpu.memory_space<vmem>>, %arg4: memref<8x128xf32, #tpu.memory_space<vmem>>) attributes {dimension_semantics = [#tpu.dimension_semantics<parallel>], iteration_bounds = array<i64: 1>, scalar_prefetch = 0 : i64, scratch_operands = 0 : i64, tpu.core_type = #tpu.core_type<tc>, window_params = [{transform_indices = @transform_0, window_bounds = array<i64: 8, 32>}, {pipeline_mode = #tpu.pipeline_mode<synchronous>, transform_indices = @transform_1, window_bounds = array<i64: 32, 128>}, {pipeline_mode = #tpu.pipeline_mode<synchronous>, transform_indices = @transform_2, window_bounds = array<i64: 1, 128>}, {transform_indices = @transform_3, window_bounds = array<i64: 8, 128>}]} {
    %c0 = arith.constant 0 : index
    %c0_0 = arith.constant 0 : index
    %0 = vector.load %arg1[%c0, %c0_0] : memref<8x32xf32, #tpu.memory_space<vmem>>, vector<8x32xf32>
    %c0_1 = arith.constant 0 : index
    %c0_2 = arith.constant 0 : index
    %1 = vector.load %arg2[%c0_1, %c0_2] : memref<32x128xf32, #tpu.memory_space<vmem>>, vector<32x128xf32>
    %cst = arith.constant dense<0.000000e+00> : vector<8x128xf32>
    %2 = tpu.matmul %0, %1, %cst {dimension_numbers = #tpu.dot_dimension_numbers<[1], [0], [0], [1], [0, 0, 1, 1], [], []>} : vector<8x32xf32>, vector<32x128xf32>, vector<8x128xf32> -> vector<8x128xf32>
    %c0_3 = arith.constant 0 : index
    %c0_4 = arith.constant 0 : index
    %3 = vector.load %arg3[%c0_3, %c0_4] : memref<1x128xf32, #tpu.memory_space<vmem>>, vector<1x128xf32>
    %4 = vector.broadcast %3 : vector<1x128xf32> to vector<8x128xf32>
    %5 = arith.addf %2, %4 : vector<8x128xf32>
    %cst_5 = arith.constant 0.000000e+00 : f32
    %6 = vector.broadcast %cst_5 : f32 to vector<8x128xf32>
    %7 = arith.maximumf %5, %6 : vector<8x128xf32>
    %c0_6 = arith.constant 0 : index
    %c0_7 = arith.constant 0 : index
    %8 = vector.load %arg4[%c0_6, %c0_7] : memref<8x128xf32, #tpu.memory_space<vmem>>, vector<8x128xf32>
    tpu.vector_store %arg4[%c0_6, %c0_7], %7 {strides = array<i32>} : memref<8x128xf32, #tpu.memory_space<vmem>>, vector<8x128xf32>,
    return
  }
  func.func @transform_0(%arg0: i32) -> (i32, i32) {
    %c0_i32 = arith.constant 0 : i32
    %c0_i32_0 = arith.constant 0 : i32
    return %arg0, %c0_i32 : i32, i32
  }
  func.func @transform_1(%arg0: i32) -> (i32, i32) {
    %c0_i32 = arith.constant 0 : i32
    %c0_i32_0 = arith.constant 0 : i32
    %c0_i32_1 = arith.constant 0 : i32
    return %c0_i32, %c0_i32_0 : i32, i32
  }
  func.func @transform_2(%arg0: i32) -> (i32, i32) {
    %c0_i32 = arith.constant 0 : i32
    %c0_i32_0 = arith.constant 0 : i32
    %c0_i32_1 = arith.constant 0 : i32
    return %c0_i32, %c0_i32_0 : i32, i32
  }
  func.func @transform_3(%arg0: i32) -> (i32, i32) {
    %c0_i32 = arith.constant 0 : i32
    %c0_i32_0 = arith.constant 0 : i32
    return %arg0, %c0_i32 : i32, i32
  }
}

</mosaic_0001>

<llo_original>
// kernel: tpu_custom_call.1
$region0: #{tpu_custom_call.1}
  #allocation0 [shape = 'u32[]', space=smem, size = 0x4, offset = 0x4, fixed_abs, tag = 'smem constant byte address 0x4 - core index']
  #allocation1 [shape = 'u32[144,128]{1,0:T(1,128)}', space=vmem, size = 0x12000, scoped, tag = 'internal scratch']
  %s0 = inlined_call_operand.hbm [shape: f32[8,32], index: 0, kind: input, shape index: {}]
  %s1 = inlined_call_operand.hbm [shape: f32[32,128], index: 1, kind: input, shape index: {}]
  %s2 = inlined_call_operand.vmem [shape: f32[1,128], index: 2, kind: input, shape index: {}]
  %s3 = inlined_call_operand.hbm [shape: f32[8,128], index: 3, kind: output, shape index: {}]
  %s4 = sld [smem:[#allocation0]]
  $region30: #{tpu_custom_call.1} parent=0
    _
  %s6 = ssub.s32 1, %s4
  %s7 = scalar_select 0, %s6, %s4
  $region1: #{tpu_custom_call.1} parent=0
    #allocation2 [shape = 'u8[4096]{0}', space=vmem, size = 0x1000, scoped, tag = 'input window, operand 0, single buffered']
    #allocation3 [shape = 's32[1]{0}', space=sflag, size = 0x4, scoped, tag = 'scoped memory for tpu_custom_call.1']
    #allocation4 [shape = 's32[1]{0}', space=sflag, size = 0x4, scoped, tag = 'scoped memory for tpu_custom_call.1']
    #allocation5 [shape = 'u8[16384]{0}', space=vmem, size = 0x4000, scoped, tag = 'input window, operand 1, single buffered']
    #allocation6 [shape = 's32[1]{0}', space=sflag, size = 0x4, scoped, tag = 'scoped memory for tpu_custom_call.1']
    #allocation7 [shape = 'u8[4096]{0}', space=vmem, size = 0x1000, scoped, tag = 'output window, operand 0, single buffered']
    %8 = vsyncpa [#allocation3], 0
    %9 = vsyncpa [#allocation6], 0
    %10 = vsyncpa [#allocation4], 0
    // Predicated region
    $region2: #{tpu_custom_call.1} parent=1 // pred_check
      _
    $region3: #{tpu_custom_call.1} parent=1 // pred_check_branch
      %12 = sbr.rel (0) target = $region5
    $region4: #{tpu_custom_call.1} parent=1 // pred_region
      %s14 = ssub.s32 128, 128
      %15 = vsyncadd [#allocation3], %s14
      %s17 = sshll.u32 [#allocation2], 4
      %s18 = int_to_ptr.vmem [resolvable:$true] %s17
      %20 = dma.hbm_to_vmem [thread:$0]  %s0, 128, %s18, [#allocation3]
    $region5: #{tpu_custom_call.1} parent=1 // pred_fallthru
      _
    // Predicated region
    $region6: #{tpu_custom_call.1} parent=1 // pred_check
      _
    $region7: #{tpu_custom_call.1} parent=1 // pred_check_branch
      %22 = sbr.rel (0) target = $region9
    $region8: #{tpu_custom_call.1} parent=1 // pred_region
      %s24 = ssub.s32 512, 512
      %25 = vsyncadd [#allocation6], %s24
      %s26 = sshll.u32 [#allocation5], 4
      %s27 = int_to_ptr.vmem [resolvable:$true] %s26
      %32 = dma.hbm_to_vmem [thread:$0]  %s1, 512, %s27, [#allocation6], 128, 128, 8
    $region9: #{tpu_custom_call.1} parent=1 // pred_fallthru
      _
    // Predicated region
    $region10: #{tpu_custom_call.1} parent=1 // pred_check
      _
    $region11: #{tpu_custom_call.1} parent=1 // pred_check_branch
      %34 = sbr.rel (0) target = $region13
    $region12: #{tpu_custom_call.1} parent=1 // pred_region
      _
    $region13: #{tpu_custom_call.1} parent=1 // pred_fallthru
      _
    // Predicated region
    $region14: #{tpu_custom_call.1} parent=1 // pred_check
      _
    $region15: #{tpu_custom_call.1} parent=1 // pred_check_branch
      %36 = sbr.rel (0) target = $region17
    $region16: #{tpu_custom_call.1} parent=1 // pred_region
      %37 = dma.done [#allocation3], 128
    $region17: #{tpu_custom_call.1} parent=1 // pred_fallthru
      _
    // Predicated region
    $region18: #{tpu_custom_call.1} parent=1 // pred_check
      _
    $region19: #{tpu_custom_call.1} parent=1 // pred_check_branch
      %39 = sbr.rel (0) target = $region21
    $region20: #{tpu_custom_call.1} parent=1 // pred_region
      %40 = dma.done [#allocation6], 512
    $region21: #{tpu_custom_call.1} parent=1 // pred_fallthru
      _
    %v41 = vld [vmem:[#allocation2] sm:$0xff]
    %v42 = vld [vmem:[#allocation5] sm:$0xff]
    %v43 = vld [vmem:[#allocation5 + $0x8] sm:$0xff]
    %v44 = vld [vmem:[#allocation5 + $0x10] sm:$0xff]
    %v45 = vld [vmem:[#allocation5 + $0x18] sm:$0xff]
    %v46 = vld [vmem:[%s2] sm:$0x1]
    %v48 = vlaneseq
    %v49 = vshrl.u32 %v48, 7
    %v50 = vsub.s32 0, %v49
    %v51 = vrot.slane %v46, %v50
    %vm53 = vcmask 261120
    %v55 = vsel %vm53, %v41, 0
    %57 = vmatprep.subr.mxu0 0.0
    %58 = vmatpush1.msra.mxu0 %v42
    %59 = vmatprep.subr.mxu0 0.0
    %60 = vmatpush1.msra.mxu0 %v43
    %61 = vmatprep.subr.mxu0 0.0
    %62 = vmatpush1.msra.mxu0 %v44
    %63 = vmatprep.subr.mxu0 0.0
    %64 = vmatpush1.msra.mxu0 %v45
    %65 = vmatprep.subr.mxu0 0.0
    %66 = vmatpush1.msra.mxu0 0.0
    %67 = vmatprep.subr.mxu0 0.0
    %68 = vmatpush1.msra.mxu0 0.0
    %69 = vmatprep.subr.mxu0 0.0
    %70 = vmatpush1.msra.mxu0 0.0
    %71 = vmatprep.subr.mxu0 0.0
    %72 = vmatpush1.msra.mxu0 0.0
    %73 = vmatprep.subr.mxu0 0.0
    %74 = vmatpush1.msra.mxu0 0.0
    %75 = vmatprep.subr.mxu0 0.0
    %76 = vmatpush1.msra.mxu0 0.0
    %77 = vmatprep.subr.mxu0 0.0
    %78 = vmatpush1.msra.mxu0 0.0
    %79 = vmatprep.subr.mxu0 0.0
    %80 = vmatpush1.msra.mxu0 0.0
    %81 = vmatprep.subr.mxu0 0.0
    %82 = vmatpush1.msra.mxu0 0.0
    %83 = vmatprep.subr.mxu0 0.0
    %84 = vmatpush1.msra.mxu0 0.0
    %85 = vmatprep.subr.mxu0 0.0
    %86 = vmatpush1.msra.mxu0 0.0
    %87 = vmatprep.subr.mxu0 0.0
    %88 = vmatpush1.msra.mxu0 0.0
    %89 = vmatprep.subr.mxu0 0.0
    %90 = vmatpush1.msra.mxu0 0.0
    %91 = vmatprep.subr.mxu0 0.0
    %92 = vmatpush1.msra.mxu0 0.0
    %93 = vmatprep.subr.mxu0 0.0
    %94 = vmatpush1.msra.mxu0 0.0
    %95 = vmatprep.subr.mxu0 0.0
    %96 = vmatpush1.msra.mxu0 0.0
    %97 = vmatprep.subr.mxu0 0.0
    %98 = vmatpush1.msra.mxu0 0.0
    %99 = vmatprep.subr.mxu0 0.0
    %100 = vmatpush1.msra.mxu0 0.0
    %101 = vmatprep.subr.mxu0 0.0
    %102 = vmatpush1.msra.mxu0 0.0
    %103 = vmatprep.subr.mxu0 0.0
    %104 = vmatpush1.msra.mxu0 0.0
    %105 = vmatprep.subr.mxu0 0.0
    %106 = vmatpush1.msra.mxu0 0.0
    %107 = vmatprep.subr.mxu0 0.0
    %108 = vmatpush1.msra.mxu0 0.0
    %109 = vmatprep.subr.mxu0 0.0
    %110 = vmatpush1.msra.mxu0 0.0
    %111 = vmatprep.subr.mxu0 0.0
    %112 = vmatpush1.msra.mxu0 0.0
    %113 = vmatprep.subr.mxu0 0.0
    %114 = vmatpush1.msra.mxu0 0.0
    %115 = vmatprep.subr.mxu0 0.0
    %116 = vmatpush1.msra.mxu0 0.0
    %117 = vmatprep.subr.mxu0 0.0
    %118 = vmatpush1.msra.mxu0 0.0
    %119 = vmatprep.subr.mxu0 0.0
    %120 = vmatpush1.msra.mxu0 0.0
    %121 = vmatprep.mubr.f32.mxu0 0.0
    %122 = vmatmul.mubr.f32.gmra.mrb[0].mxu0 %v55
    %v123 = vpop.f32.mrb[0].mxu0
    %v124 = vadd.f32 %v51, %v123
    %v125 = vpop.f32.mrb[0].mxu0
    %126 = vdwg.mxu0
    %v127 = vmax.f32 %v124, 0.0
    %128 = vst [vmem:[#allocation7] sm:$0xff] %v127
    // Predicated region
    $region22: #{tpu_custom_call.1} parent=1 // pred_check
      _
    $region23: #{tpu_custom_call.1} parent=1 // pred_check_branch
      %130 = sbr.rel (0) target = $region25
    $region24: #{tpu_custom_call.1} parent=1 // pred_region
      %s132 = ssub.s32 128, 128
      %133 = vsyncadd [#allocation4], %s132
      %s135 = sshll.u32 [#allocation7], 4
      %s136 = int_to_ptr.vmem [resolvable:$true] %s135
      %138 = dma.vmem_to_hbm [thread:$0]  %s136, 128, %s3, [#allocation4]
    $region25: #{tpu_custom_call.1} parent=1 // pred_fallthru
      _
    // Predicated region
    $region26: #{tpu_custom_call.1} parent=1 // pred_check
      _
    $region27: #{tpu_custom_call.1} parent=1 // pred_check_branch
      %140 = sbr.rel (0) target = $region29
    $region28: #{tpu_custom_call.1} parent=1 // pred_region
      %141 = dma.done [#allocation4], 128
    $region29: #{tpu_custom_call.1} parent=1 // pred_fallthru
      _
    %142 = vsyncpa [#allocation3], 1
    %143 = vsyncpa [#allocation6], 1
    %144 = vsyncpa [#allocation4], 1

</llo_original>
